<compile_context>
chip_gen: v5e
topology: v5e:2x2
jax: 0.10.0
libtpu: 0.0.40
codegen_flags: <defaults>
</compile_context>

<pallas_src>
import functools

import jax
import jax.numpy as jnp
from jax.experimental import pallas as pl
from jax.experimental.pallas import tpu as pltpu

_LANES = 128
_SUBLANES = 8


def _fold(v, acc_rows):
    """(S,128) -> (acc_rows,128) partial sum.

    For acc_rows == 8 the reshape splits the sublane axis on vreg boundaries, so
    this is pure element-wise VPU adds (no per-step cross-lane reduction)."""
    s = v.shape[0]
    if acc_rows == 1:
        return jnp.sum(v, axis=0, keepdims=True)
    if s == acc_rows:
        return v
    return jnp.sum(v.reshape(s // acc_rows, acc_rows, _LANES), axis=0)


def _wbce_sums_kernel(x_ref, t_ref, *out_refs, n_classes, n_valid, spp, total_q,
                      acc_rows, need_mask, need_skip):
    sa_ref, sb_ref = out_refs[0], out_refs[1]
    st_ref = out_refs[2] if n_classes == 1 else None  # only the binary path needs pos-count

    sp = pl.program_id(1)
    j = pl.program_id(2)
    q = sp * spp + j                      # global row-block index

    @pl.when(j == 0)
    def _init():
        sa_ref[...] = jnp.zeros_like(sa_ref)
        sb_ref[...] = jnp.zeros_like(sb_ref)
        if st_ref is not None:
            st_ref[...] = jnp.zeros_like(st_ref)

    s_rows = x_ref.shape[2]
    eps = jnp.float32(1e-6)

    # ---- heavy per-pixel math (mask-free hot path, casts done in-kernel) ----
    if n_classes == 1:
        x = x_ref[...][0, 0].astype(jnp.float32)              # (S,128)
        t = t_ref[...][0, 0].astype(jnp.float32)              # (S,128)
        p = pl.reciprocal(1.0 + jnp.exp(-x), approx=True)     # sigmoid, 1 EUP recip
        sa = t * jnp.log(p + eps)
        sb = (1.0 - t) * jnp.log(1.0 - p + eps)
        st = t
    else:
        x = x_ref[...][0].astype(jnp.float32)                 # (C,S,128)
        lbl = t_ref[...][0, 0].astype(jnp.int32)               # (S,128)
        # Softmax over C: C is an outer (non-vreg) dim, so these axis=0
        # reductions are plain element-wise VPU ops on (S,128) vregs.
        m = jnp.max(x, axis=0, keepdims=True)
        e = jnp.exp(x - m)
        inv = pl.reciprocal(jnp.sum(e, axis=0), approx=True)   # 1 recip / pixel
        p = e * inv[None]
        onehot = (jax.lax.broadcasted_iota(jnp.int32, x.shape, 0)
                  == lbl[None]).astype(jnp.float32)
        # One-hot target: sum_c t_c*log(p_c+eps) == log(p_target+eps).
        p_t = jnp.sum(onehot * p, axis=0)                      # (S,128)
        sa = jnp.log(p_t + eps)
        sb = jnp.sum((1.0 - onehot) * jnp.log(1.0 - p + eps), axis=0)
        st = None                                              # pos-count is static

    def _accum(sa_v, sb_v, st_v):
        sa_ref[...] += _fold(sa_v, acc_rows)[None, None]
        sb_ref[...] += _fold(sb_v, acc_rows)[None, None]
        if st_ref is not None:
            st_ref[...] += _fold(st_v, acc_rows)[None, None]

    if not (need_mask or need_skip):
        _accum(sa, sb, st)                                     # fully aligned case
    else:
        interior = (q < total_q - 1) if need_mask else (q < total_q)

        @pl.when(interior)
        def _unmasked():
            _accum(sa, sb, st)

        if need_mask:
            # Validity mask is built (and applied) only on the last block; where()
            # (not multiply) so garbage/NaN in OOB rows can never leak through.
            @pl.when(q == total_q - 1)
            def _masked():
                row = jax.lax.broadcasted_iota(jnp.int32, (s_rows, _LANES), 0)
                lane = jax.lax.broadcasted_iota(jnp.int32, (s_rows, _LANES), 1)
                flat = (q * s_rows + row) * _LANES + lane
                valid = flat < n_valid
                zero = jnp.float32(0.0)
                _accum(jnp.where(valid, sa, zero),
                       jnp.where(valid, sb, zero),
                       None if st is None else jnp.where(valid, st, zero))
        # Blocks with q >= total_q (skip overhang of the split axis) do nothing;
        # their index_map is clamped to the last valid block.


def weighted_bce_loss(logits, target, n_classes, *, block_bytes=4 << 20,
                      n_splits=None, vmem_limit_bytes=None):
    """Pallas implementation of WeightedBinaryCrossEntropyLoss.forward (NCHW logits).

    block_bytes ~4 MiB works on v5e/v6e with default scoped VMEM; on v7x use
    6-8 MiB and pass vmem_limit_bytes accordingly."""
    B = logits.shape[0]
    C = n_classes
    x = logits.reshape(B, C, -1)                 # native dtype, no f32 upcast
    N = x.shape[-1]

    t = target.reshape(B, 1, N)
    if n_classes == 1:
        if t.dtype == jnp.bool_:
            t = t.astype(jnp.uint8)              # still 1 B/px
    else:
        if not jnp.issubdtype(t.dtype, jnp.integer):
            t = t.astype(jnp.int32)              # matches torch .long()
        # narrow integer labels (uint8/int8/int16) pass through untouched

    # Pad only to the next multiple of 128 (needed for the (rows,128) lane
    # re-layout); block-level alignment is handled in-kernel -> no full-block
    # pad copy. For typical image sizes this pad is zero.
    rows = pl.cdiv(N, _LANES)
    pad = rows * _LANES - N
    if pad:
        x = jnp.pad(x, ((0, 0), (0, 0), (0, pad)))
        t = jnp.pad(t, ((0, 0), (0, 0), (0, pad)))
    x4 = x.reshape(B, C, rows, _LANES)
    t4 = t.reshape(B, 1, rows, _LANES)

    # Block sizing from actual bytes per 128-px row (logits dtype + label dtype).
    row_bytes = _LANES * (C * x4.dtype.itemsize + t4.dtype.itemsize)
    budget = max(1, block_bytes // row_bytes)
    if budget >= 32:
        budget = budget // 32 * 32               # match int8/bf16 sublane tiles
    elif budget >= 8:
        budget = budget // 8 * 8
    else:
        budget = 8
    if rows >= 8:
        cap = rows // 32 * 32 if rows >= 32 else rows // 8 * 8
        s_rows = max(8, min(budget, cap))
        acc_rows = _SUBLANES                     # lane-dense (8,128) accumulators
    else:
        s_rows = rows                            # tiny input: single full-dim block
        acc_rows = 1

    total_q = pl.cdiv(rows, s_rows)
    if n_splits is None:
        # v7x (2 TCs/chip): add a second parallel axis when the batch axis alone
        # cannot shard evenly; harmless on single-TC v5e/v6e.
        n_splits = 2 if (B % 2 == 1 and total_q >= 2) else 1
    n_splits = max(1, min(n_splits, total_q))
    spp = pl.cdiv(total_q, n_splits)             # reduction steps per split
    need_skip = n_splits * spp != total_q
    need_mask = total_q * s_rows * _LANES != N

    def _rowblk(sp, j):
        q = sp * spp + j
        return jnp.minimum(q, total_q - 1) if need_skip else q

    x_spec = pl.BlockSpec((1, C, s_rows, _LANES),
                          lambda b, sp, j: (b, 0, _rowblk(sp, j), 0))
    t_spec = pl.BlockSpec((1, 1, s_rows, _LANES),
                          lambda b, sp, j: (b, 0, _rowblk(sp, j), 0))
    o_spec = pl.BlockSpec((1, 1, acc_rows, _LANES),
                          lambda b, sp, j: (b, sp, 0, 0))
    part = jax.ShapeDtypeStruct((B, n_splits, acc_rows, _LANES), jnp.float32)
    n_out = 3 if n_classes == 1 else 2           # st accumulator only for binary path

    kernel = functools.partial(
        _wbce_sums_kernel, n_classes=n_classes, n_valid=N, spp=spp,
        total_q=total_q, acc_rows=acc_rows, need_mask=need_mask,
        need_skip=need_skip)

    outs = pl.pallas_call(
        kernel,
        out_shape=(part,) * n_out,
        grid_spec=pltpu.PrefetchScalarGridSpec(
            num_scalar_prefetch=0,
            grid=(B, n_splits, spp),
            in_specs=[x_spec, t_spec],
            out_specs=[o_spec] * n_out,
        ),
        compiler_params=pltpu.CompilerParams(
            dimension_semantics=("parallel", "parallel", "arbitrary"),
            vmem_limit_bytes=vmem_limit_bytes),
    )(x4, t4)

    # Tiny scalar epilogue (global ratio weighting) in plain JAX.
    numel = jnp.float32(B * C * N)
    sa = jnp.sum(outs[0])
    sb = jnp.sum(outs[1])
    if n_classes == 1:
        pos = jnp.sum(outs[2])
        ratio = (numel - pos) / pos              # inf/NaN w/o positives, as in PyTorch
    else:
        ratio = jnp.float32(n_classes - 1)       # one-hot: pos == B*N exactly
    ratio_one = ratio / (ratio + 1.0)
    ratio_zero = 1.0 / (ratio + 1.0)
    return -2.0 * (ratio_one * sa + ratio_zero * sb) / numel


def _ref_loss(logits, target, n_classes):
    # Pure-JAX reference mirroring the PyTorch forward pass (f32 math).
    eps = 1e-6
    B = logits.shape[0]
    x = logits.astype(jnp.float32)
    if n_classes == 1:
        p = jax.nn.sigmoid(x).reshape(B, 1, -1)
        t = target.reshape(B, 1, -1).astype(jnp.float32)
    else:
        p = jax.nn.softmax(x, axis=1).reshape(B, n_classes, -1)
        lbl = target.reshape(B, -1)
        t = jnp.transpose(
            jax.nn.one_hot(lbl, n_classes, dtype=jnp.float32), (0, 2, 1))
    pf = p.reshape(-1)
    tf = t.reshape(-1)
    pos = tf.sum()
    neg = tf.size - pos
    ratio = neg / pos
    ro = ratio / (ratio + 1.0)
    rz = 1.0 / (ratio + 1.0)
    return -2.0 * jnp.mean(
        ro * tf * jnp.log(pf + eps) + rz * (1.0 - tf) * jnp.log(1.0 - pf + eps))


if __name__ == "__main__":
    key = jax.random.PRNGKey(0)
    ks = jax.random.split(key, 8)
    # Tolerance is 5e-3 (not 1e-4) because the kernel uses the hardware approx
    # reciprocal (pl.reciprocal(approx=True)) for the sigmoid/softmax denominators.
    tol = dict(atol=5e-3, rtol=5e-3)

    def check(name, loss, ref):
        loss = jax.block_until_ready(loss)
        assert jnp.allclose(loss, ref, **tol), (name, float(loss), float(ref))

    # T1: multi-class, aligned tiny spatial (single block, uint8 labels).
    B, C, H, W = 2, 4, 16, 16
    x1 = jax.random.normal(ks[0], (B, C, H, W), dtype=jnp.float32)
    y1 = jax.random.randint(ks[1], (B, 1, H, W), 0, C).astype(jnp.uint8)
    check("multiclass_small", weighted_bce_loss(x1, y1, C), _ref_loss(x1, y1, C))

    # T2: multi-class, bf16 logits, N not a multiple of 128, odd batch
    #     -> exercises lane/row tail masking + the extra parallel split axis.
    B, C, H, W = 1, 3, 40, 40
    x2 = jax.random.normal(ks[2], (B, C, H, W), dtype=jnp.bfloat16)
    y2 = jax.random.randint(ks[3], (B, 1, H, W), 0, C, dtype=jnp.int32)
    check("multiclass_bf16_ragged", weighted_bce_loss(x2, y2, C), _ref_loss(x2, y2, C))

    # T3: binary (sigmoid) path, f32 target.
    B, H, W = 2, 16, 16
    x3 = jax.random.normal(ks[4], (B, 1, H, W), dtype=jnp.float32)
    y3 = (jax.random.uniform(ks[5], (B, 1, H, W)) > 0.5).astype(jnp.float32)
    check("binary", weighted_bce_loss(x3, y3, 1), _ref_loss(x3, y3, 1))

    # T4: multi-class, multi-step reduction with a clamped/skipped tail block
    #     (small block_bytes forces several row blocks; B odd -> 2 splits).
    B, C, H, W = 1, 2, 80, 128
    x4 = jax.random.normal(ks[6], (B, C, H, W), dtype=jnp.float32)
    y4 = jax.random.randint(ks[7], (B, 1, H, W), 0, C).astype(jnp.uint8)
    check("multiclass_skip_tail",
          weighted_bce_loss(x4, y4, C, block_bytes=64 << 10),
          _ref_loss(x4, y4, C))

    print("KERNEL_OK")
</pallas_src>

<mosaic_0001>
module attributes {stable_mosaic.version = 11 : i64} {
  func.func @_wbce_sums_kernel(%arg0: i32, %arg1: i32, %arg2: i32, %arg3: memref<1x4x2x128xf32, #tpu.memory_space<vmem>>, %arg4: memref<1x1x2x128xi8, #tpu.memory_space<vmem>>, %arg5: memref<1x1x1x128xf32, #tpu.memory_space<vmem>>, %arg6: memref<1x1x1x128xf32, #tpu.memory_space<vmem>>) attributes {dimension_semantics = [#tpu.dimension_semantics<parallel>, #tpu.dimension_semantics<parallel>, #tpu.dimension_semantics<arbitrary>], iteration_bounds = array<i64: 2, 1, 1>, scalar_prefetch = 0 : i64, scratch_operands = 0 : i64, tpu.core_type = #tpu.core_type<tc>, window_params = [{transform_indices = @transform_0, window_bounds = array<i64: 1, 4, 2, 128>}, {transform_indices = @transform_1, window_bounds = array<i64: 1, 1, 2, 128>}, {transform_indices = @transform_2, window_bounds = array<i64: 1, 1, 1, 128>}, {transform_indices = @transform_3, window_bounds = array<i64: 1, 1, 1, 128>}]} {
    %c0_i32 = arith.constant 0 : i32
    %0 = arith.cmpi eq, %arg2, %c0_i32 : i32
    %1 = arith.extui %0 : i1 to i32
    %c0_i32_0 = arith.constant 0 : i32
    %2 = arith.cmpi ne, %1, %c0_i32_0 : i32
    scf.if %2 {
      %cst_33 = arith.constant 0.000000e+00 : f32
      %50 = vector.broadcast %cst_33 : f32 to vector<1x1x1x128xf32>
      %c0_34 = arith.constant 0 : index
      %c0_35 = arith.constant 0 : index
      %c0_36 = arith.constant 0 : index
      %c0_37 = arith.constant 0 : index
      %51 = vector.load %arg5[%c0_34, %c0_35, %c0_36, %c0_37] : memref<1x1x1x128xf32, #tpu.memory_space<vmem>>, vector<1x1x1x128xf32>
      tpu.vector_store %arg5[%c0_34, %c0_35, %c0_36, %c0_37], %50 {strides = array<i32>} : memref<1x1x1x128xf32, #tpu.memory_space<vmem>>, vector<1x1x1x128xf32>,
      %cst_38 = arith.constant 0.000000e+00 : f32
      %52 = vector.broadcast %cst_38 : f32 to vector<1x1x1x128xf32>
      %c0_39 = arith.constant 0 : index
      %c0_40 = arith.constant 0 : index
      %c0_41 = arith.constant 0 : index
      %c0_42 = arith.constant 0 : index
      %53 = vector.load %arg6[%c0_39, %c0_40, %c0_41, %c0_42] : memref<1x1x1x128xf32, #tpu.memory_space<vmem>>, vector<1x1x1x128xf32>
      tpu.vector_store %arg6[%c0_39, %c0_40, %c0_41, %c0_42], %52 {strides = array<i32>} : memref<1x1x1x128xf32, #tpu.memory_space<vmem>>, vector<1x1x1x128xf32>,
    } else {
    }
    %c0 = arith.constant 0 : index
    %c0_1 = arith.constant 0 : index
    %c0_2 = arith.constant 0 : index
    %c0_3 = arith.constant 0 : index
    %3 = vector.load %arg3[%c0, %c0_1, %c0_2, %c0_3] : memref<1x4x2x128xf32, #tpu.memory_space<vmem>>, vector<1x4x2x128xf32>
    %4 = vector.shape_cast %3 : vector<1x4x2x128xf32> to vector<4x2x128xf32>
    %c0_4 = arith.constant 0 : index
    %c0_5 = arith.constant 0 : index
    %c0_6 = arith.constant 0 : index
    %c0_7 = arith.constant 0 : index
    %5 = vector.load %arg4[%c0_4, %c0_5, %c0_6, %c0_7] : memref<1x1x2x128xi8, #tpu.memory_space<vmem>>, vector<1x1x2x128xi8>
    %6 = vector.shape_cast %5 : vector<1x1x2x128xi8> to vector<2x128xi8>
    %7 = arith.extui %6 : vector<2x128xi8> to vector<2x128xi32>
    %cst = arith.constant dense<0xFF800000> : vector<2x128xf32>
    %8 = vector.multi_reduction <maximumf>, %4, %cst [0] : vector<4x2x128xf32> to vector<2x128xf32>
    %9 = vector.shape_cast %8 : vector<2x128xf32> to vector<1x2x128xf32>
    %10 = vector.broadcast %9 : vector<1x2x128xf32> to vector<4x2x128xf32>
    %11 = arith.subf %4, %10 : vector<4x2x128xf32>
    %12 = math.exp %11 : vector<4x2x128xf32>
    %cst_8 = arith.constant dense<0.000000e+00> : vector<2x128xf32>
    %13 = vector.multi_reduction <add>, %12, %cst_8 [0] : vector<4x2x128xf32> to vector<2x128xf32>
    %14 = tpu.reciprocal %13 {approx = true} : vector<2x128xf32> -> vector<2x128xf32>
    %15 = vector.shape_cast %14 : vector<2x128xf32> to vector<1x2x128xf32>
    %16 = vector.broadcast %15 : vector<1x2x128xf32> to vector<4x2x128xf32>
    %17 = arith.mulf %12, %16 : vector<4x2x128xf32>
    %18 = tpu.iota {dimensions = array<i32: 0>} : vector<4x2x128xi32>
    %19 = vector.shape_cast %7 : vector<2x128xi32> to vector<1x2x128xi32>
    %20 = vector.broadcast %19 : vector<1x2x128xi32> to vector<4x2x128xi32>
    %21 = arith.cmpi eq, %18, %20 : vector<4x2x128xi32>
    %22 = arith.extui %21 : vector<4x2x128xi1> to vector<4x2x128xi32>
    %23 = arith.sitofp %22 : vector<4x2x128xi32> to vector<4x2x128xf32>
    %24 = arith.mulf %23, %17 : vector<4x2x128xf32>
    %cst_9 = arith.constant dense<0.000000e+00> : vector<2x128xf32>
    %25 = vector.multi_reduction <add>, %24, %cst_9 [0] : vector<4x2x128xf32> to vector<2x128xf32>
    %cst_10 = arith.constant 9.99999997E-7 : f32
    %26 = vector.broadcast %cst_10 : f32 to vector<2x128xf32>
    %27 = arith.addf %25, %26 : vector<2x128xf32>
    %28 = math.log %27 : vector<2x128xf32>
    %cst_11 = arith.constant 1.000000e+00 : f32
    %29 = vector.broadcast %cst_11 : f32 to vector<4x2x128xf32>
    %30 = arith.subf %29, %23 : vector<4x2x128xf32>
    %cst_12 = arith.constant 1.000000e+00 : f32
    %31 = vector.broadcast %cst_12 : f32 to vector<4x2x128xf32>
    %32 = arith.subf %31, %17 : vector<4x2x128xf32>
    %cst_13 = arith.constant 9.99999997E-7 : f32
    %33 = vector.broadcast %cst_13 : f32 to vector<4x2x128xf32>
    %34 = arith.addf %32, %33 : vector<4x2x128xf32>
    %35 = math.log %34 : vector<4x2x128xf32>
    %36 = arith.mulf %30, %35 : vector<4x2x128xf32>
    %cst_14 = arith.constant dense<0.000000e+00> : vector<2x128xf32>
    %37 = vector.multi_reduction <add>, %36, %cst_14 [0] : vector<4x2x128xf32> to vector<2x128xf32>
    %c0_15 = arith.constant 0 : index
    %c0_16 = arith.constant 0 : index
    %c0_17 = arith.constant 0 : index
    %c0_18 = arith.constant 0 : index
    %38 = vector.load %arg5[%c0_15, %c0_16, %c0_17, %c0_18] : memref<1x1x1x128xf32, #tpu.memory_space<vmem>>, vector<1x1x1x128xf32>
    %cst_19 = arith.constant dense<0.000000e+00> : vector<128xf32>
    %39 = vector.multi_reduction <add>, %28, %cst_19 [0] : vector<2x128xf32> to vector<128xf32>
    %40 = vector.shape_cast %39 : vector<128xf32> to vector<1x128xf32>
    %41 = vector.shape_cast %40 : vector<1x128xf32> to vector<1x1x1x128xf32>
    %42 = arith.addf %38, %41 : vector<1x1x1x128xf32>
    %c0_20 = arith.constant 0 : index
    %c0_21 = arith.constant 0 : index
    %c0_22 = arith.constant 0 : index
    %c0_23 = arith.constant 0 : index
    %43 = vector.load %arg5[%c0_20, %c0_21, %c0_22, %c0_23] : memref<1x1x1x128xf32, #tpu.memory_space<vmem>>, vector<1x1x1x128xf32>
    tpu.vector_store %arg5[%c0_20, %c0_21, %c0_22, %c0_23], %42 {strides = array<i32>} : memref<1x1x1x128xf32, #tpu.memory_space<vmem>>, vector<1x1x1x128xf32>,
    %c0_24 = arith.constant 0 : index
    %c0_25 = arith.constant 0 : index
    %c0_26 = arith.constant 0 : index
    %c0_27 = arith.constant 0 : index
    %44 = vector.load %arg6[%c0_24, %c0_25, %c0_26, %c0_27] : memref<1x1x1x128xf32, #tpu.memory_space<vmem>>, vector<1x1x1x128xf32>
    %cst_28 = arith.constant dense<0.000000e+00> : vector<128xf32>
    %45 = vector.multi_reduction <add>, %37, %cst_28 [0] : vector<2x128xf32> to vector<128xf32>
    %46 = vector.shape_cast %45 : vector<128xf32> to vector<1x128xf32>
    %47 = vector.shape_cast %46 : vector<1x128xf32> to vector<1x1x1x128xf32>
    %48 = arith.addf %44, %47 : vector<1x1x1x128xf32>
    %c0_29 = arith.constant 0 : index
    %c0_30 = arith.constant 0 : index
    %c0_31 = arith.constant 0 : index
    %c0_32 = arith.constant 0 : index
    %49 = vector.load %arg6[%c0_29, %c0_30, %c0_31, %c0_32] : memref<1x1x1x128xf32, #tpu.memory_space<vmem>>, vector<1x1x1x128xf32>
    tpu.vector_store %arg6[%c0_29, %c0_30, %c0_31, %c0_32], %48 {strides = array<i32>} : memref<1x1x1x128xf32, #tpu.memory_space<vmem>>, vector<1x1x1x128xf32>,
    return
  }
  func.func @transform_0(%arg0: i32, %arg1: i32, %arg2: i32) -> (i32, i32, i32, i32) {
    %c1_i32 = arith.constant 1 : i32
    %0 = arith.muli %arg1, %c1_i32 : i32
    %1 = arith.addi %0, %arg2 : i32
    %c0_i32 = arith.constant 0 : i32
    %c0_i32_0 = arith.constant 0 : i32
    %c0_i32_1 = arith.constant 0 : i32
    return %arg0, %c0_i32, %1, %c0_i32_0 : i32, i32, i32, i32
  }
  func.func @transform_1(%arg0: i32, %arg1: i32, %arg2: i32) -> (i32, i32, i32, i32) {
    %c1_i32 = arith.constant 1 : i32
    %0 = arith.muli %arg1, %c1_i32 : i32
    %1 = arith.addi %0, %arg2 : i32
    %c0_i32 = arith.constant 0 : i32
    %c0_i32_0 = arith.constant 0 : i32
    %c0_i32_1 = arith.constant 0 : i32
    return %arg0, %c0_i32, %1, %c0_i32_0 : i32, i32, i32, i32
  }
  func.func @transform_2(%arg0: i32, %arg1: i32, %arg2: i32) -> (i32, i32, i32, i32) {
    %c0_i32 = arith.constant 0 : i32
    %c0_i32_0 = arith.constant 0 : i32
    %c0_i32_1 = arith.constant 0 : i32
    return %arg0, %arg1, %c0_i32, %c0_i32_0 : i32, i32, i32, i32
  }
  func.func @transform_3(%arg0: i32, %arg1: i32, %arg2: i32) -> (i32, i32, i32, i32) {
    %c0_i32 = arith.constant 0 : i32
    %c0_i32_0 = arith.constant 0 : i32
    %c0_i32_1 = arith.constant 0 : i32
    return %arg0, %arg1, %c0_i32, %c0_i32_0 : i32, i32, i32, i32
  }
}

</mosaic_0001>

<llo_original>
// kernel: tpu_custom_call.1
$region0: #{tpu_custom_call.1}
  #allocation0 [shape = 'u32[]', space=smem, size = 0x4, offset = 0x4, fixed_abs, tag = 'smem constant byte address 0x4 - core index']
  #allocation1 [shape = 'u32[72,128]{1,0:T(1,128)}', space=vmem, size = 0x9000, scoped, tag = 'internal scratch']
  %s0 = inlined_call_operand.hbm [shape: f32[2,4,2,128], index: 0, kind: input, shape index: {}]
  %s1 = inlined_call_operand.hbm [shape: u8[2,1,2,128], index: 1, kind: input, shape index: {}]
  %s2 = inlined_call_operand.hbm [shape: f32[2,1,1,128], index: 2, kind: output, shape index: {0}]
  %s3 = inlined_call_operand.hbm [shape: f32[2,1,1,128], index: 3, kind: output, shape index: {1}]
  %4 = xla_tuple %s2, %s3
  %s5 = sld [smem:[#allocation0]]
  $region61: #{tpu_custom_call.1} parent=0
    _
  %s7 = ssub.s32 1, %s5
  %s8 = scalar_select 0, %s7, %s5
  $region1: #{tpu_custom_call.1} parent=0
    #allocation2 [shape = 'u8[8192]{0}', space=vmem, size = 0x2000, scoped, tag = 'input window, operand 0']
    #allocation3 [shape = 's32[2]{0}', space=sflag, size = 0x8, scoped, tag = 'scoped memory for tpu_custom_call.1']
    #allocation4 [shape = 's32[2]{0}', space=sflag, size = 0x8, scoped, tag = 'scoped memory for tpu_custom_call.1']
    #allocation5 [shape = 'u8[1024]{0}', space=vmem, size = 0x400, scoped, tag = 'input window, operand 1']
    #allocation6 [shape = 's32[2]{0}', space=sflag, size = 0x8, scoped, tag = 'scoped memory for tpu_custom_call.1']
    #allocation7 [shape = 'u8[1024]{0}', space=vmem, size = 0x400, scoped, tag = 'output window, operand 0']
    #allocation8 [shape = 'u8[1024]{0}', space=vmem, size = 0x400, scoped, tag = 'output window, operand 1']
    #allocation9 [shape = 's32[2]{0}', space=sflag, size = 0x8, scoped, tag = 'scoped memory for tpu_custom_call.1']
    %9 = vsyncpa [#allocation3], 0
    %s10 = scalar_lea.sflag [#allocation3], 1
    %11 = vsyncpa %s10, 0
    %12 = vsyncpa [#allocation6], 0
    %s13 = scalar_lea.sflag [#allocation6], 1
    %14 = vsyncpa %s13, 0
    %15 = vsyncpa [#allocation4], 0
    %s16 = scalar_lea.sflag [#allocation4], 1
    %17 = vsyncpa %s16, 0
    %18 = vsyncpa [#allocation9], 0
    %s19 = scalar_lea.sflag [#allocation9], 1
    %20 = vsyncpa %s19, 0
    loop: start=0, step=1, limit=4
    $region2: #{tpu_custom_call.1} parent=1 // loop_pre_header
      _
    $region3: #{tpu_custom_call.1} parent=1 // loop_header
      %s22 = sphi 0, %s26
      %p23 = scmp.ge.s32.totalorder %s22, 4
      %s29 = sphi 0, %s48
      %s30 = sphi 0, %s44
      %s31 = sphi 0, %s40
      %s32 = sphi 0, %s29
      %s33 = sphi 0, %s30
      %s34 = sphi 0, %s31
      %s35 = sphi 0, %s32
      %s36 = sphi 0, %s33
      %s37 = sphi 0, %s34
      %s55 = sphi 0, %s57
      %s58 = sphi 0, %s55
      %s59 = sphi 0, %s58
      %s75 = sphi 0, %s59
      %s85 = sphi 0, %s87
      %s88 = sphi 0, %s85
      %s89 = sphi 0, %s88
      %s105 = sphi 0, %s89
      %s113 = sphi 0, %s115
      %s116 = sphi 0, %s113
      %s117 = sphi 0, %s116
      %s133 = sphi 0, %s117
      %s141 = sphi 0, %s143
      %s144 = sphi 0, %s141
      %s145 = sphi 0, %s144
      %s161 = sphi 0, %s145
    $region4: #{tpu_custom_call.1} parent=1 // loop_header_branch
      %25 = sbr.rel (%p23) target = $region8
    $region5: #{tpu_custom_call.1} parent=1 // loop_body
      %s27 = ssub.s32 %s22, 1
      %s28 = ssub.s32 %s22, 2
      %s38 = sadd.s32 1, %s31
      %p39 = scmp.ge.s32.totalorder %s38, 1
      %s40 = scalar_select %p39, 0, %s38
      %s41 = sadd.s32 1, %s30
      %s42 = scalar_select %p39, %s41, %s30
      %p43 = scmp.ge.s32.totalorder %s42, 1
      %s44 = scalar_select %p43, 0, %s42
      %s45 = sadd.s32 1, %s29
      %s46 = scalar_select %p43, %s45, %s29
      %p47 = scmp.ge.s32.totalorder %s46, 2
      %s48 = scalar_select %p47, 0, %s46
      %s49 = sadd.s32 %s30, %s31
      %s50 = sadd.s32 %s44, %s40
      %s51 = ssub.s32 %s29, %s48
      %s52 = ssub.s32 %s49, %s50
      %s53 = sor.u32 %s51, %s52
      %p54 = scmp.eq.s32.totalorder %s53, 0
      %s56 = sadd.s32 %s55, 1
      %s57 = scalar_select %p54, %s55, %s56
      %p60 = pneg %p54
      %p61 = scmp.eq.s32.totalorder %s22, 1
      %p62 = por %p60, %p61
      %p63 = scmp.ne.s32.totalorder %s55, %s58
      %p64 = scmp.eq.s32.totalorder %s22, 0
      %p65 = por %p63, %p64
      %p66 = scmp.ne.s32.totalorder %s55, %s58
      %p67 = scmp.eq.s32.totalorder %s27, 1
      %p68 = por %p66, %p67
      %p69 = scmp.ne.s32.totalorder %s58, %s59
      %p70 = scmp.eq.s32.totalorder %s27, 0
      %p71 = por %p69, %p70
      %p72 = scmp.ne.s32.totalorder %s58, %s59
      %p73 = scmp.eq.s32.totalorder %s28, 1
      %p74 = por %p72, %p73
      %p76 = scmp.ne.s32.totalorder %s59, %s75
      %p77 = scmp.eq.s32.totalorder %s28, 0
      %p78 = por %p76, %p77
      %s79 = sadd.s32 %s30, %s31
      %s80 = sadd.s32 %s44, %s40
      %s81 = ssub.s32 %s29, %s48
      %s82 = ssub.s32 %s79, %s80
      %s83 = sor.u32 %s81, %s82
      %p84 = scmp.eq.s32.totalorder %s83, 0
      %s86 = sadd.s32 %s85, 1
      %s87 = scalar_select %p84, %s85, %s86
      %p90 = pneg %p84
      %p91 = scmp.eq.s32.totalorder %s22, 1
      %p92 = por %p90, %p91
      %p93 = scmp.ne.s32.totalorder %s85, %s88
      %p94 = scmp.eq.s32.totalorder %s22, 0
      %p95 = por %p93, %p94
      %p96 = scmp.ne.s32.totalorder %s85, %s88
      %p97 = scmp.eq.s32.totalorder %s27, 1
      %p98 = por %p96, %p97
      %p99 = scmp.ne.s32.totalorder %s88, %s89
      %p100 = scmp.eq.s32.totalorder %s27, 0
      %p101 = por %p99, %p100
      %p102 = scmp.ne.s32.totalorder %s88, %s89
      %p103 = scmp.eq.s32.totalorder %s28, 1
      %p104 = por %p102, %p103
      %p106 = scmp.ne.s32.totalorder %s89, %s105
      %p107 = scmp.eq.s32.totalorder %s28, 0
      %p108 = por %p106, %p107
      %s109 = ssub.s32 %s29, %s48
      %s110 = ssub.s32 %s30, %s44
      %s111 = sor.u32 %s109, %s110
      %p112 = scmp.eq.s32.totalorder %s111, 0
      %s114 = sadd.s32 %s113, 1
      %s115 = scalar_select %p112, %s113, %s114
      %p118 = pneg %p112
      %p119 = scmp.eq.s32.totalorder %s22, 1
      %p120 = por %p118, %p119
      %p121 = scmp.ne.s32.totalorder %s113, %s116
      %p122 = scmp.eq.s32.totalorder %s22, 0
      %p123 = por %p121, %p122
      %p124 = scmp.ne.s32.totalorder %s113, %s116
      %p125 = scmp.eq.s32.totalorder %s27, 1
      %p126 = por %p124, %p125
      %p127 = scmp.ne.s32.totalorder %s116, %s117
      %p128 = scmp.eq.s32.totalorder %s27, 0
      %p129 = por %p127, %p128
      %p130 = scmp.ne.s32.totalorder %s116, %s117
      %p131 = scmp.eq.s32.totalorder %s28, 1
      %p132 = por %p130, %p131
      %p134 = scmp.ne.s32.totalorder %s117, %s133
      %p135 = scmp.eq.s32.totalorder %s28, 0
      %p136 = por %p134, %p135
      %s137 = ssub.s32 %s29, %s48
      %s138 = ssub.s32 %s30, %s44
      %s139 = sor.u32 %s137, %s138
      %p140 = scmp.eq.s32.totalorder %s139, 0
      %s142 = sadd.s32 %s141, 1
      %s143 = scalar_select %p140, %s141, %s142
      %p146 = pneg %p140
      %p147 = scmp.eq.s32.totalorder %s22, 1
      %p148 = por %p146, %p147
      %p149 = scmp.ne.s32.totalorder %s141, %s144
      %p150 = scmp.eq.s32.totalorder %s22, 0
      %p151 = por %p149, %p150
      %p152 = scmp.ne.s32.totalorder %s141, %s144
      %p153 = scmp.eq.s32.totalorder %s27, 1
      %p154 = por %p152, %p153
      %p155 = scmp.ne.s32.totalorder %s144, %s145
      %p156 = scmp.eq.s32.totalorder %s27, 0
      %p157 = por %p155, %p156
      %p158 = scmp.ne.s32.totalorder %s144, %s145
      %p159 = scmp.eq.s32.totalorder %s28, 1
      %p160 = por %p158, %p159
      %p162 = scmp.ne.s32.totalorder %s145, %s161
      %p163 = scmp.eq.s32.totalorder %s28, 0
      %p164 = por %p162, %p163
      %p165 = scmp.le.s32.totalorder 1, %s22
      %p166 = scmp.lt.s32.totalorder %s22, 3
      %p167 = pnand %p165, %p166
      %p168 = pneg %p167
      // Predicated region
      $region9: #{tpu_custom_call.1} parent=5 // pred_check
        _
      $region10: #{tpu_custom_call.1} parent=5 // pred_check_branch
        %170 = sbr.rel (%p167) target = $region12
      $region11: #{tpu_custom_call.1} parent=5 // pred_region
        %s171 = ssub.s32 %s22, 1
      $region12: #{tpu_custom_call.1} parent=5 // pred_fallthru
        _
      %p172 = scmp.lt.s32.totalorder %s22, 2
      // Predicated region
      $region13: #{tpu_custom_call.1} parent=5 // pred_check
        %p173 = pneg %p172
      $region14: #{tpu_custom_call.1} parent=5 // pred_check_branch
        %175 = sbr.rel (%p173) target = $region16
      $region15: #{tpu_custom_call.1} parent=5 // pred_region
        // Predicated region
        $region17: #{tpu_custom_call.1} parent=15 // pred_check
          %p176 = pneg %p65
        $region18: #{tpu_custom_call.1} parent=15 // pred_check_branch
          %178 = sbr.rel (%p176) target = $region20
        $region19: #{tpu_custom_call.1} parent=15 // pred_region
          %s179 = sand.u32 %s55, 1
          %s180 = scalar_lea.sflag [#allocation3], %s179
          %s181 = sand.u32 %s55, 1
          %s182 = smul.addr %s181, 8
          %s183 = scalar_lea.vmem [#allocation2], %s182
          %s184 = sadd.s32 %s30, %s31
          %186 = vsyncadd %s180, 0
          %s187 = smul.addr %s29, 4
          %s188 = sadd.s32 %s184, %s187
          %s189 = smul.addr %s188, 2
          %s190 = scalar_lea.hbm %s0, %s189
          %s191 = sshll.u32 %s190, 4
          %s192 = int_to_ptr.hbm [resolvable:$true] %s191
          %s193 = sshll.u32 %s183, 4
          %s194 = int_to_ptr.vmem [resolvable:$true] %s193
          %199 = dma.hbm_to_vmem [thread:$0]  %s192, 128, %s194, %s180, 32, 32, 2
        $region20: #{tpu_custom_call.1} parent=15 // pred_fallthru
          _
        // Predicated region
        $region21: #{tpu_custom_call.1} parent=15 // pred_check
          %p200 = pneg %p95
        $region22: #{tpu_custom_call.1} parent=15 // pred_check_branch
          %202 = sbr.rel (%p200) target = $region24
        $region23: #{tpu_custom_call.1} parent=15 // pred_region
          %s203 = sand.u32 %s85, 1
          %s204 = scalar_lea.sflag [#allocation6], %s203
          %s205 = sand.u32 %s85, 1
          %s206 = scalar_lea.vmem [#allocation5], %s205
          %s207 = sadd.s32 %s30, %s31
          %209 = vsyncadd %s204, 0
          %s210 = sadd.s32 %s207, %s29
          %s211 = scalar_lea.hbm %s1, %s210
          %s213 = sshll.u32 %s211, 4
          %s214 = int_to_ptr.hbm [resolvable:$true] %s213
          %s215 = sshll.u32 %s206, 4
          %s216 = int_to_ptr.vmem [resolvable:$true] %s215
          %218 = dma.hbm_to_vmem [thread:$0]  %s214, 16, %s216, %s204
        $region24: #{tpu_custom_call.1} parent=15 // pred_fallthru
          _
      $region16: #{tpu_custom_call.1} parent=5 // pred_fallthru
        _
      %p219 = scmp.le.s32.totalorder 1, %s22
      %p220 = scmp.lt.s32.totalorder %s22, 3
      %p221 = pnand %p219, %p220
      %p222 = pneg %p221
      // Predicated region
      $region25: #{tpu_custom_call.1} parent=5 // pred_check
        _
      $region26: #{tpu_custom_call.1} parent=5 // pred_check_branch
        %224 = sbr.rel (%p221) target = $region28
      $region27: #{tpu_custom_call.1} parent=5 // pred_region
        %s225 = ssub.s32 %s22, 1
        %s226 = sand.u32 %s58, 1
        %s227 = scalar_lea.sflag [#allocation3], %s226
        %s228 = sand.u32 %s58, 1
        %s229 = smul.addr %s228, 8
        %s230 = scalar_lea.vmem [#allocation2], %s229
        // Predicated region
        $region29: #{tpu_custom_call.1} parent=27 // pred_check
          %p231 = pneg %p71
        $region30: #{tpu_custom_call.1} parent=27 // pred_check_branch
          %233 = sbr.rel (%p231) target = $region32
        $region31: #{tpu_custom_call.1} parent=27 // pred_region
          %235 = dma.done %s227, 128
        $region32: #{tpu_custom_call.1} parent=27 // pred_fallthru
          _
        %s236 = sand.u32 %s88, 1
        %s237 = scalar_lea.sflag [#allocation6], %s236
        %s238 = sand.u32 %s88, 1
        %s239 = scalar_lea.vmem [#allocation5], %s238
        // Predicated region
        $region33: #{tpu_custom_call.1} parent=27 // pred_check
          %p240 = pneg %p101
        $region34: #{tpu_custom_call.1} parent=27 // pred_check_branch
          %242 = sbr.rel (%p240) target = $region36
        $region35: #{tpu_custom_call.1} parent=27 // pred_region
          %244 = dma.done %s237, 16
        $region36: #{tpu_custom_call.1} parent=27 // pred_fallthru
          _
        %s245 = sand.u32 %s58, 1
        %s246 = scalar_lea.sflag [#allocation3], %s245
        %s247 = sand.u32 %s58, 1
        %s248 = smul.addr %s247, 8
        %s249 = scalar_lea.vmem [#allocation2], %s248
        %p250 = pneg %p71
        %p251 = pneg %p68
        %s252 = sand.u32 %s88, 1
        %s253 = scalar_lea.sflag [#allocation6], %s252
        %s254 = sand.u32 %s88, 1
        %s255 = scalar_lea.vmem [#allocation5], %s254
        %p256 = pneg %p101
        %p257 = pneg %p98
        %p258 = pneg %p129
        %p259 = pneg %p126
        %s260 = sand.u32 %s116, 1
        %s261 = scalar_lea.sflag [#allocation4], %s260
        %s262 = sand.u32 %s116, 1
        %s263 = scalar_lea.vmem [#allocation7], %s262
        %p264 = pneg %p157
        %p265 = pneg %p154
        %s266 = sand.u32 %s144, 1
        %s267 = scalar_lea.sflag [#allocation9], %s266
        %s268 = sand.u32 %s144, 1
        %s269 = scalar_lea.vmem [#allocation8], %s268
        %s270 = sadd.s32 %s33, %s34
        %s271 = sadd.s32 %s33, %s34
        %p272 = scmp.eq.s32.totalorder %s34, 0
        // Predicated region
        $region37: #{tpu_custom_call.1} parent=27 // pred_check
          %p273 = pneg %p272
        $region38: #{tpu_custom_call.1} parent=27 // pred_check_branch
          %275 = sbr.rel (%p273) target = $region40
        $region39: #{tpu_custom_call.1} parent=27 // pred_region
          %276 = vst [vmem:[%s263] sm:$0x1] 0.0
          %277 = vst [vmem:[%s269] sm:$0x1] 0.0
        $region40: #{tpu_custom_call.1} parent=27 // pred_fallthru
          _
        %v278 = vld [vmem:[%s230] sm:$0x3]
        %v279 = vld [vmem:[%s230 + $0x2] sm:$0x3]
        %v280 = vld [vmem:[%s230 + $0x4] sm:$0x3]
        %v281 = vld [vmem:[%s230 + $0x6] sm:$0x3]
        %v282 = vld [vmem:[%s239] sm:$0x1]
        %v283 = vunpack.c.0.s8 %v282
        %v284 = vand.u32 %v283, 255
        %vm285 = vcmask 1041408
        %v286 = vsel %vm285, %v278, -inf
        %v287 = vsel %vm285, %v279, -inf
        %v288 = vsel %vm285, %v280, -inf
        %v289 = vsel %vm285, %v281, -inf
        %v290 = vmax.f32 %v286, %v287
        %v291 = vmax.f32 %v288, %v289
        %v292 = vmax.f32 %v290, %v291
        %v293 = vsub.f32 %v278, %v292
        %v294 = vsub.f32 %v279, %v292
        %v295 = vsub.f32 %v280, %v292
        %v296 = vsub.f32 %v281, %v292
        %v297 = vmul.f32 %v293, 1.442695
        %v298 = vpow.pop %v297
        %v299 = vmul.f32 %v294, 1.442695
        %v300 = vpow.pop %v299
        %v301 = vmul.f32 %v295, 1.442695
        %v302 = vpow.pop %v301
        %v303 = vmul.f32 %v296, 1.442695
        %v304 = vpow.pop %v303
        %v305 = vsel %vm285, %v298, 0.0
        %v306 = vsel %vm285, %v300, 0.0
        %v307 = vadd.f32 %v305, %v306
        %v308 = vsel %vm285, %v302, 0.0
        %v309 = vadd.f32 %v307, %v308
        %v310 = vsel %vm285, %v304, 0.0
        %v311 = vadd.f32 %v309, %v310
        %v312 = vrcp.pop %v311
        %v313 = vmul.f32 %v298, %v312
        %v314 = vmul.f32 %v300, %v312
        %v315 = vmul.f32 %v302, %v312
        %v316 = vmul.f32 %v304, %v312
        %vm317 = vcmp.eq.s32.totalorder %v284, 0
        %vm318 = vcmp.eq.s32.totalorder %v284, 1
        %vm319 = vcmp.eq.s32.totalorder %v284, 2
        %vm320 = vcmp.eq.s32.totalorder %v284, 3
        %v321 = vsel %vm317, 1, 0
        %v322 = vsel %vm318, 1, 0
        %v323 = vsel %vm319, 1, 0
        %v324 = vsel %vm320, 1, 0
        %v325 = vcvt.s32.f32 %v321
        %v326 = vcvt.s32.f32 %v322
        %v327 = vcvt.s32.f32 %v323
        %v328 = vcvt.s32.f32 %v324
        %v329 = vmul.f32 %v325, %v313
        %v330 = vmul.f32 %v326, %v314
        %v331 = vmul.f32 %v327, %v315
        %v332 = vmul.f32 %v328, %v316
        %v333 = vsel %vm285, %v329, 0.0
        %v334 = vsel %vm285, %v330, 0.0
        %v335 = vadd.f32 %v333, %v334
        %v336 = vsel %vm285, %v331, 0.0
        %v337 = vadd.f32 %v335, %v336
        %v338 = vsel %vm285, %v332, 0.0
        %v339 = vadd.f32 %v337, %v338
        %v340 = vadd.f32 %v339, 1e-06
        %v341 = vlog2.pop %v340
        %v342 = vmul.f32 %v341, 0.6931472
        %v343 = vsub.f32 1.0, %v325
        %v344 = vsub.f32 1.0, %v326
        %v345 = vsub.f32 1.0, %v327
        %v346 = vsub.f32 1.0, %v328
        %v347 = vsub.f32 1.0, %v313
        %v348 = vsub.f32 1.0, %v314
        %v349 = vsub.f32 1.0, %v315
        %v350 = vsub.f32 1.0, %v316
        %v351 = vadd.f32 %v347, 1e-06
        %v352 = vadd.f32 %v348, 1e-06
        %v353 = vadd.f32 %v349, 1e-06
        %v354 = vadd.f32 %v350, 1e-06
        %v355 = vlog2.pop %v351
        %v356 = vmul.f32 %v355, 0.6931472
        %v357 = vlog2.pop %v352
        %v358 = vmul.f32 %v357, 0.6931472
        %v359 = vlog2.pop %v353
        %v360 = vmul.f32 %v359, 0.6931472
        %v361 = vlog2.pop %v354
        %v362 = vmul.f32 %v361, 0.6931472
        %v363 = vmul.f32 %v343, %v356
        %v364 = vmul.f32 %v344, %v358
        %v365 = vmul.f32 %v345, %v360
        %v366 = vmul.f32 %v346, %v362
        %v367 = vsel %vm285, %v363, 0.0
        %v368 = vsel %vm285, %v364, 0.0
        %v369 = vadd.f32 %v367, %v368
        %v370 = vsel %vm285, %v365, 0.0
        %v371 = vadd.f32 %v369, %v370
        %v372 = vsel %vm285, %v366, 0.0
        %v373 = vadd.f32 %v371, %v372
        %v374 = vld [vmem:[%s263] sm:$0x1]
        %v375 = vsel %vm285, %v342, 0.0
        %v376 = vrot.slane %v375, 4
        %v377 = vadd.f32 %v375, %v376
        %v378 = vrot.slane %v377, 2
        %v379 = vadd.f32 %v377, %v378
        %v380 = vrot.slane %v379, 1
        %v381 = vadd.f32 %v379, %v380
        %v382 = vadd.f32 %v374, %v381
        %383 = vst [vmem:[%s263] sm:$0x1] %v382
        %v384 = vld [vmem:[%s269] sm:$0x1]
        %v385 = vsel %vm285, %v373, 0.0
        %v386 = vrot.slane %v385, 4
        %v387 = vadd.f32 %v385, %v386
        %v388 = vrot.slane %v387, 2
        %v389 = vadd.f32 %v387, %v388
        %v390 = vrot.slane %v389, 1
        %v391 = vadd.f32 %v389, %v390
        %v392 = vadd.f32 %v384, %v391
        %393 = vst [vmem:[%s269] sm:$0x1] %v392
        %s394 = sand.u32 %s116, 1
        %s395 = scalar_lea.sflag [#allocation4], %s394
        %s396 = sand.u32 %s116, 1
        %s397 = scalar_lea.vmem [#allocation7], %s396
        %s398 = sand.u32 %s144, 1
        %s399 = scalar_lea.sflag [#allocation9], %s398
        %s400 = sand.u32 %s144, 1
        %s401 = scalar_lea.vmem [#allocation8], %s400
        // Predicated region
        $region41: #{tpu_custom_call.1} parent=27 // pred_check
          %p402 = pneg %p126
        $region42: #{tpu_custom_call.1} parent=27 // pred_check_branch
          %404 = sbr.rel (%p402) target = $region44
        $region43: #{tpu_custom_call.1} parent=27 // pred_region
          %406 = vsyncadd %s395, 0
          %s407 = sadd.s32 %s33, %s32
          %s408 = scalar_lea.hbm %s2, %s407
          %s410 = sshll.u32 %s397, 4
          %s411 = int_to_ptr.vmem [resolvable:$true] %s410
          %s412 = sshll.u32 %s408, 4
          %s413 = int_to_ptr.hbm [resolvable:$true] %s412
          %415 = dma.vmem_to_hbm [thread:$0]  %s411, 16, %s413, %s395
        $region44: #{tpu_custom_call.1} parent=27 // pred_fallthru
          _
        // Predicated region
        $region45: #{tpu_custom_call.1} parent=27 // pred_check
          %p416 = pneg %p154
        $region46: #{tpu_custom_call.1} parent=27 // pred_check_branch
          %418 = sbr.rel (%p416) target = $region48
        $region47: #{tpu_custom_call.1} parent=27 // pred_region
          %420 = vsyncadd %s399, 0
          %s421 = sadd.s32 %s33, %s32
          %s422 = scalar_lea.hbm %s3, %s421
          %s424 = sshll.u32 %s401, 4
          %s425 = int_to_ptr.vmem [resolvable:$true] %s424
          %s426 = sshll.u32 %s422, 4
          %s427 = int_to_ptr.hbm [resolvable:$true] %s426
          %429 = dma.vmem_to_hbm [thread:$0]  %s425, 16, %s427, %s399
        $region48: #{tpu_custom_call.1} parent=27 // pred_fallthru
          _
      $region28: #{tpu_custom_call.1} parent=5 // pred_fallthru
        _
      %p430 = scmp.le.s32.totalorder 2, %s22
      // Predicated region
      $region49: #{tpu_custom_call.1} parent=5 // pred_check
        %p431 = pneg %p430
      $region50: #{tpu_custom_call.1} parent=5 // pred_check_branch
        %433 = sbr.rel (%p431) target = $region52
      $region51: #{tpu_custom_call.1} parent=5 // pred_region
        %s434 = ssub.s32 %s22, 2
        // Predicated region
        $region53: #{tpu_custom_call.1} parent=51 // pred_check
          %p435 = pneg %p132
        $region54: #{tpu_custom_call.1} parent=51 // pred_check_branch
          %437 = sbr.rel (%p435) target = $region56
        $region55: #{tpu_custom_call.1} parent=51 // pred_region
          %s438 = sand.u32 %s117, 1
          %s439 = scalar_lea.sflag [#allocation4], %s438
          %s440 = sand.u32 %s117, 1
          %s441 = scalar_lea.vmem [#allocation7], %s440
          %443 = dma.done %s439, 16
        $region56: #{tpu_custom_call.1} parent=51 // pred_fallthru
          _
        // Predicated region
        $region57: #{tpu_custom_call.1} parent=51 // pred_check
          %p444 = pneg %p160
        $region58: #{tpu_custom_call.1} parent=51 // pred_check_branch
          %446 = sbr.rel (%p444) target = $region60
        $region59: #{tpu_custom_call.1} parent=51 // pred_region
          %s447 = sand.u32 %s145, 1
          %s448 = scalar_lea.sflag [#allocation9], %s447
          %s449 = sand.u32 %s145, 1
          %s450 = scalar_lea.vmem [#allocation8], %s449
          %452 = dma.done %s448, 16
        $region60: #{tpu_custom_call.1} parent=51 // pred_fallthru
          _
      $region52: #{tpu_custom_call.1} parent=5 // pred_fallthru
        _
    $region6: #{tpu_custom_call.1} parent=1 // loop_footer
      %s26 = sadd.s32 1, %s22
    $region7: #{tpu_custom_call.1} parent=1 // loop_footer_branch
      %21 = sbr.rel target = $region3
    $region8: #{tpu_custom_call.1} parent=1 // loop_exit
      _
    %453 = vsyncpa [#allocation3], 1
    %s454 = scalar_lea.sflag [#allocation3], 1
    %455 = vsyncpa %s454, 1
    %456 = vsyncpa [#allocation6], 1
    %s457 = scalar_lea.sflag [#allocation6], 1
    %458 = vsyncpa %s457, 1
    %459 = vsyncpa [#allocation4], 1
    %s460 = scalar_lea.sflag [#allocation4], 1
    %461 = vsyncpa %s460, 1
    %462 = vsyncpa [#allocation9], 1
    %s463 = scalar_lea.sflag [#allocation9], 1
    %464 = vsyncpa %s463, 1

</llo_original>
